<compile_context>
chip_gen: v7x
topology: tpu7x:2x2x1
jax: 0.10.0
libtpu: 0.0.40
codegen_flags: <defaults>
</compile_context>

<pallas_src>
import jax
import jax.numpy as jnp
from jax.experimental import pallas as pl
from jax.experimental.pallas import tpu as pltpu


def _to_3tuple(v):
    return (v, v, v) if isinstance(v, int) else tuple(v)


def _round_up(x, m):
    return (x + m - 1) // m * m


def _choose_row_tile(p_pad, max_tile=512):
    """Largest multiple of 16 that divides p_pad and is <= max_tile."""
    tile = 16
    cand = 16
    while cand <= min(max_tile, p_pad):
        if p_pad % cand == 0:
            tile = cand
        cand += 16
    return tile


# ----------------------------- Pallas kernel --------------------------------


def _patch_embed_kernel(patches_ref, w_ref, pos_ref, out_ref):
    # patches_ref: (tm, Kp)  bf16   -- row tile of flattened patches
    # w_ref:       (Kp, Ep)  bf16   -- flattened Conv3d weight (resident)
    # pos_ref:     (tm, Ep)  f32    -- positional embedding + conv bias
    # out_ref:     (tm, Ep)
    acc = jnp.dot(patches_ref[...], w_ref[...],
                  preferred_element_type=jnp.float32)    # MXU, f32 accumulate
    out_ref[...] = (acc + pos_ref[...]).astype(out_ref.dtype)


def patch_embed_forward(x, weight, bias, pos_emb, patch_size,
                        compute_dtype=jnp.bfloat16, max_row_tile=512):
    """x: (B, C, D, H, W); weight: (E, C, pd, ph, pw); bias: (E,);
    pos_emb: (1, num_patches, E).  Returns (B, num_patches, E)."""
    B, C, D, H, W = x.shape
    pd, ph, pw = patch_size
    E = weight.shape[0]
    Dp, Hp, Wp = D // pd, H // ph, W // pw
    P = Dp * Hp * Wp
    K = C * pd * ph * pw

    # MXU / lane-aligned padded sizes.
    K_pad = _round_up(K, 128)
    E_pad = _round_up(E, 128)
    P_pad = _round_up(P, 16)          # multiple of 16: bf16 sublane friendly

    # --- glue (layout only): im2col patchify, cast to bf16, pad, flatten ---
    xp = x.astype(compute_dtype).reshape(B, C, Dp, pd, Hp, ph, Wp, pw)
    xp = xp.transpose(0, 2, 4, 6, 1, 3, 5, 7)            # (B,Dp,Hp,Wp,C,pd,ph,pw)
    patches = xp.reshape(B, P, K)
    patches = jnp.pad(patches, ((0, 0), (0, P_pad - P), (0, K_pad - K)))
    patches = patches.reshape(B * P_pad, K_pad)          # (M_pad, K_pad) bf16

    # Conv3d weight (E, C, pd, ph, pw) -> (K, E), zero-padded, bf16.
    w2d = weight.reshape(E, K).T.astype(compute_dtype)
    w2d = jnp.pad(w2d, ((0, K_pad - K), (0, E_pad - E)))  # (K_pad, E_pad)

    # Fold the Conv3d bias into the positional embedding (f32 epilogue add).
    pos = pos_emb[0].astype(jnp.float32) + bias.astype(jnp.float32)[None, :]
    pos = jnp.pad(pos, ((0, P_pad - P), (0, E_pad - E)))  # (P_pad, E_pad) f32

    # Row tiling: tiles divide P_pad so every row tile stays within one batch
    # element and the pos block index is (tile_idx mod tiles_per_batch).
    tm = _choose_row_tile(P_pad, max_row_tile)
    n_p_tiles = P_pad // tm
    M_pad = B * P_pad
    grid = (M_pad // tm,)

    out_dtype = x.dtype
    itemsize = jnp.dtype(out_dtype).itemsize
    cost = pl.CostEstimate(
        flops=2 * M_pad * K_pad * E_pad,
        transcendentals=0,
        bytes_accessed=(patches.size * patches.dtype.itemsize
                        + w2d.size * w2d.dtype.itemsize
                        + pos.size * pos.dtype.itemsize
                        + M_pad * E_pad * itemsize),
    )

    out = pl.pallas_call(
        _patch_embed_kernel,
        out_shape=jax.ShapeDtypeStruct((M_pad, E_pad), out_dtype),
        grid_spec=pltpu.PrefetchScalarGridSpec(
            num_scalar_prefetch=0,
            grid=grid,
            in_specs=[
                # row tile of flattened patches
                pl.BlockSpec((tm, K_pad), lambda i: (i, 0)),
                # full weight, resident across all grid steps
                pl.BlockSpec((K_pad, E_pad), lambda i: (0, 0)),
                # pos(+bias) tile; repeats every n_p_tiles steps (per batch)
                pl.BlockSpec((tm, E_pad), lambda i: (i % n_p_tiles, 0)),
            ],
            out_specs=pl.BlockSpec((tm, E_pad), lambda i: (i, 0)),
        ),
        compiler_params=pltpu.CompilerParams(
            dimension_semantics=("parallel",),
        ),
        cost_estimate=cost,
    )(patches, w2d, pos)

    # Slice away padding: (M_pad, E_pad) -> (B, P, E)
    return out.reshape(B, P_pad, E_pad)[:, :P, :E]


# ----------------------------- module wrapper --------------------------------


class PatchEmbedPallas:
    def __init__(self, img_size=8, patch_size=4, in_chans=3, embed_dim=32,
                 dtype=jnp.float32, key=None):
        img_size = _to_3tuple(img_size)
        patch_size = _to_3tuple(patch_size)
        self.img_size = img_size
        self.patch_size = patch_size
        self.patch_shape = tuple(img_size[i] // patch_size[i] for i in range(3))
        self.num_patches = (
            self.patch_shape[0] * self.patch_shape[1] * self.patch_shape[2]
        )
        E = embed_dim
        C = in_chans
        pd, ph, pw = patch_size
        K = C * pd * ph * pw

        key = key if key is not None else jax.random.PRNGKey(0)
        k_w, k_b, k_p = jax.random.split(key, 3)

        # Deterministic init (synthetic; mirrors PyTorch shapes, not values).
        bound = 1.0 / jnp.sqrt(jnp.float32(K))
        self.weight = jax.random.uniform(
            k_w, (E, C, pd, ph, pw), dtype=dtype, minval=-bound, maxval=bound)
        self.bias = jax.random.uniform(
            k_b, (E,), dtype=dtype, minval=-bound, maxval=bound)
        # trunc_normal_(std=0.02)
        self.positional_embeddings = (
            0.02 * jax.random.truncated_normal(
                k_p, -2.0, 2.0, (1, self.num_patches, E)).astype(dtype))

    def __call__(self, x, interpolate_pos_encoding=False):
        B, C, D, H, W = x.shape
        assert (D == self.img_size[0] and H == self.img_size[1]
                and W == self.img_size[2]), (
            f"Input image size ({D}*{H}*{W}) doesn't match model "
            f"({self.img_size[0]}*{self.img_size[1]}*{self.img_size[2]}).")
        # TODO(synk): interpolate_pos_encoding is unused in the reference
        # forward as well; ignored here too.
        return patch_embed_forward(
            x, self.weight, self.bias, self.positional_embeddings,
            self.patch_size)


# ---------------------------------- main -------------------------------------


if __name__ == "__main__":
    key = jax.random.PRNGKey(0)
    k_x, k_m = jax.random.split(key)

    B, C = 2, 3
    img_size, patch_size, embed_dim = 8, 4, 32

    module = PatchEmbedPallas(img_size=img_size, patch_size=patch_size,
                              in_chans=C, embed_dim=embed_dim, key=k_m)

    x = jax.random.normal(
        k_x, (B, C, img_size, img_size, img_size), dtype=jnp.float32)

    out = module(x)
    out = jax.block_until_ready(out)

    # Reference check in plain JAX (strided Conv3d == patchify + matmul),
    # emulating the kernel's bf16 MXU feed with f32 accumulation.
    pd, ph, pw = module.patch_size
    Dp, Hp, Wp = module.patch_shape
    P = module.num_patches
    K = C * pd * ph * pw
    xp = x.reshape(B, C, Dp, pd, Hp, ph, Wp, pw).transpose(0, 2, 4, 6, 1, 3, 5, 7)
    patches = xp.reshape(B, P, K)
    p_bf = patches.astype(jnp.bfloat16).astype(jnp.float32)
    w_bf = (module.weight.reshape(embed_dim, K).T
            .astype(jnp.bfloat16).astype(jnp.float32))
    ref = (jnp.einsum("bpk,ke->bpe", p_bf, w_bf,
                      precision=jax.lax.Precision.HIGHEST)
           + module.bias[None, None, :] + module.positional_embeddings)

    assert out.shape == (B, P, embed_dim), out.shape
    assert jnp.allclose(out, ref, atol=1e-3, rtol=1e-3), (
        float(jnp.max(jnp.abs(out - ref))))
    print("KERNEL_OK")
</pallas_src>

<mosaic_0001>
module attributes {stable_mosaic.version = 11 : i64} {
  func.func @_patch_embed_kernel(%arg0: i32, %arg1: memref<16x256xbf16, #tpu.memory_space<vmem>>, %arg2: memref<256x128xbf16, #tpu.memory_space<vmem>>, %arg3: memref<16x128xf32, #tpu.memory_space<vmem>>, %arg4: memref<16x128xf32, #tpu.memory_space<vmem>>) attributes {dimension_semantics = [#tpu.dimension_semantics<parallel>], iteration_bounds = array<i64: 2>, scalar_prefetch = 0 : i64, scratch_operands = 0 : i64, tpu.core_type = #tpu.core_type<tc>, window_params = [{transform_indices = @transform_0, window_bounds = array<i64: 16, 256>}, {pipeline_mode = #tpu.pipeline_mode<synchronous>, transform_indices = @transform_1, window_bounds = array<i64: 256, 128>}, {transform_indices = @transform_2, window_bounds = array<i64: 16, 128>}, {transform_indices = @transform_3, window_bounds = array<i64: 16, 128>}]} {
    %c0 = arith.constant 0 : index
    %c0_0 = arith.constant 0 : index
    %0 = vector.load %arg1[%c0, %c0_0] : memref<16x256xbf16, #tpu.memory_space<vmem>>, vector<16x256xbf16>
    %c0_1 = arith.constant 0 : index
    %c0_2 = arith.constant 0 : index
    %1 = vector.load %arg2[%c0_1, %c0_2] : memref<256x128xbf16, #tpu.memory_space<vmem>>, vector<256x128xbf16>
    %cst = arith.constant dense<0.000000e+00> : vector<16x128xf32>
    %2 = tpu.matmul %0, %1, %cst {dimension_numbers = #tpu.dot_dimension_numbers<[1], [0], [0], [1], [0, 0, 1, 1], [], []>} : vector<16x256xbf16>, vector<256x128xbf16>, vector<16x128xf32> -> vector<16x128xf32>
    %c0_3 = arith.constant 0 : index
    %c0_4 = arith.constant 0 : index
    %3 = vector.load %arg3[%c0_3, %c0_4] : memref<16x128xf32, #tpu.memory_space<vmem>>, vector<16x128xf32>
    %4 = arith.addf %2, %3 : vector<16x128xf32>
    %c0_5 = arith.constant 0 : index
    %c0_6 = arith.constant 0 : index
    %5 = vector.load %arg4[%c0_5, %c0_6] : memref<16x128xf32, #tpu.memory_space<vmem>>, vector<16x128xf32>
    tpu.vector_store %arg4[%c0_5, %c0_6], %4 {strides = array<i32>} : memref<16x128xf32, #tpu.memory_space<vmem>>, vector<16x128xf32>,
    return
  }
  func.func @transform_0(%arg0: i32) -> (i32, i32) {
    %c0_i32 = arith.constant 0 : i32
    %c0_i32_0 = arith.constant 0 : i32
    return %arg0, %c0_i32 : i32, i32
  }
  func.func @transform_1(%arg0: i32) -> (i32, i32) {
    %c0_i32 = arith.constant 0 : i32
    %c0_i32_0 = arith.constant 0 : i32
    %c0_i32_1 = arith.constant 0 : i32
    return %c0_i32, %c0_i32_0 : i32, i32
  }
  func.func @transform_2(%arg0: i32) -> (i32, i32) {
    %c1_i32 = arith.constant 1 : i32
    %c0_i32 = arith.constant 0 : i32
    %0 = arith.cmpi eq, %c1_i32, %c0_i32 : i32
    %c1_i32_0 = arith.constant 1 : i32
    %1 = arith.select %0, %c1_i32_0, %c1_i32 : i32
    %2 = arith.remsi %arg0, %1 : i32
    %c0_i32_1 = arith.constant 0 : i32
    %3 = arith.cmpi ne, %2, %c0_i32_1 : i32
    %c0_i32_2 = arith.constant 0 : i32
    %4 = arith.cmpi slt, %2, %c0_i32_2 : i32
    %c0_i32_3 = arith.constant 0 : i32
    %5 = arith.cmpi slt, %1, %c0_i32_3 : i32
    %6 = arith.xori %4, %5 : i1
    %7 = arith.andi %6, %3 : i1
    %8 = arith.addi %2, %1 : i32
    %9 = arith.select %7, %8, %2 : i32
    %c0_i32_4 = arith.constant 0 : i32
    %c0_i32_5 = arith.constant 0 : i32
    return %9, %c0_i32_4 : i32, i32
  }
  func.func @transform_3(%arg0: i32) -> (i32, i32) {
    %c0_i32 = arith.constant 0 : i32
    %c0_i32_0 = arith.constant 0 : i32
    return %arg0, %c0_i32 : i32, i32
  }
}

</mosaic_0001>

<llo_original>
// kernel: tpu_custom_call.1
$region0: #{tpu_custom_call.1}
  #allocation0 [shape = 'u32[]', space=smem, size = 0x4, offset = 0x4, fixed_abs, tag = 'smem constant byte address 0x4 - core index']
  #allocation1 [shape = 'u32[144,128]{1,0:T(1,128)}', space=vmem, size = 0x12000, scoped, tag = 'internal scratch']
  %s0 = inlined_call_operand.hbm [shape: bf16[32,256], index: 0, kind: input, shape index: {}]
  %s1 = inlined_call_operand.hbm [shape: bf16[256,128], index: 1, kind: input, shape index: {}]
  %s2 = inlined_call_operand.hbm [shape: f32[16,128], index: 2, kind: input, shape index: {}]
  %s3 = inlined_call_operand.hbm [shape: f32[32,128], index: 3, kind: output, shape index: {}]
  %s4 = sld [smem:[#allocation0]]
  $region57: #{tpu_custom_call.1} parent=0
    _
  %s6 = ssub.s32 1, %s4
  %s7 = scalar_select 0, %s6, %s4
  $region1: #{tpu_custom_call.1} parent=0
    #allocation2 [shape = 'u8[16384]{0}', space=vmem, size = 0x4000, scoped, tag = 'input window, operand 0']
    #allocation3 [shape = 's32[2]{0}', space=sflag, size = 0x8, scoped, tag = 'scoped memory for tpu_custom_call.1']
    #allocation4 [shape = 's32[2]{0}', space=sflag, size = 0x8, scoped, tag = 'scoped memory for tpu_custom_call.1']
    #allocation5 [shape = 'u8[65536]{0}', space=vmem, size = 0x10000, scoped, tag = 'input window, operand 1, single buffered']
    #allocation6 [shape = 's32[1]{0}', space=sflag, size = 0x4, scoped, tag = 'scoped memory for tpu_custom_call.1']
    #allocation7 [shape = 'u8[8192]{0}', space=vmem, size = 0x2000, scoped, tag = 'input window, operand 2, single buffered']
    #allocation8 [shape = 'u8[16384]{0}', space=vmem, size = 0x4000, scoped, tag = 'output window, operand 0']
    %8 = vsyncpa [#allocation3], 0
    %s9 = scalar_lea.sflag [#allocation3], 1
    %10 = vsyncpa %s9, 0
    %11 = vsyncpa [#allocation6], 0
    %12 = vsyncpa [#allocation4], 0
    %s13 = scalar_lea.sflag [#allocation4], 1
    %14 = vsyncpa %s13, 0
    loop: start=0, step=1, limit=4
    $region2: #{tpu_custom_call.1} parent=1 // loop_pre_header
      _
    $region3: #{tpu_custom_call.1} parent=1 // loop_header
      %s16 = sphi 0, %s20
      %p17 = scmp.ge.s32.totalorder %s16, 4
      %s26 = sphi 0, %s28
      %s29 = sphi 0, %s26
      %s30 = sphi 0, %s29
      %s46 = sphi 0, %s30
      %s50 = sphi 0, %s50
      %s52 = sphi 0, %s50
      %s53 = sphi 0, %s52
      %s67 = sphi 0, %s53
      %s71 = sphi 0, %s71
      %s73 = sphi 0, %s71
      %s74 = sphi 0, %s73
      %s88 = sphi 0, %s74
      %s94 = sphi 0, %s96
      %s97 = sphi 0, %s94
      %s98 = sphi 0, %s97
      %s114 = sphi 0, %s98
    $region4: #{tpu_custom_call.1} parent=1 // loop_header_branch
      %19 = sbr.rel (%p17) target = $region8
    $region5: #{tpu_custom_call.1} parent=1 // loop_body
      %s21 = ssub.s32 %s16, 1
      %s22 = ssub.s32 %s16, 2
      %s23 = sadd.s32 %s16, 1
      %s24 = ssub.s32 %s16, %s23
      %p25 = scmp.eq.s32.totalorder %s24, 0
      %s27 = sadd.s32 %s26, 1
      %s28 = scalar_select %p25, %s26, %s27
      %p31 = pneg %p25
      %p32 = scmp.eq.s32.totalorder %s16, 1
      %p33 = por %p31, %p32
      %p34 = scmp.ne.s32.totalorder %s26, %s29
      %p35 = scmp.eq.s32.totalorder %s16, 0
      %p36 = por %p34, %p35
      %p37 = scmp.ne.s32.totalorder %s26, %s29
      %p38 = scmp.eq.s32.totalorder %s21, 1
      %p39 = por %p37, %p38
      %p40 = scmp.ne.s32.totalorder %s29, %s30
      %p41 = scmp.eq.s32.totalorder %s21, 0
      %p42 = por %p40, %p41
      %p43 = scmp.ne.s32.totalorder %s29, %s30
      %p44 = scmp.eq.s32.totalorder %s22, 1
      %p45 = por %p43, %p44
      %p47 = scmp.ne.s32.totalorder %s30, %s46
      %p48 = scmp.eq.s32.totalorder %s22, 0
      %p49 = por %p47, %p48
      %s51 = sadd.s32 %s50, 1
      %p54 = scmp.eq.s32.totalorder %s16, 1
      %p55 = scmp.ne.s32.totalorder %s50, %s52
      %p56 = scmp.eq.s32.totalorder %s16, 0
      %p57 = por %p55, %p56
      %p58 = scmp.ne.s32.totalorder %s50, %s52
      %p59 = scmp.eq.s32.totalorder %s21, 1
      %p60 = por %p58, %p59
      %p61 = scmp.ne.s32.totalorder %s52, %s53
      %p62 = scmp.eq.s32.totalorder %s21, 0
      %p63 = por %p61, %p62
      %p64 = scmp.ne.s32.totalorder %s52, %s53
      %p65 = scmp.eq.s32.totalorder %s22, 1
      %p66 = por %p64, %p65
      %p68 = scmp.ne.s32.totalorder %s53, %s67
      %p69 = scmp.eq.s32.totalorder %s22, 0
      %p70 = por %p68, %p69
      %s72 = sadd.s32 %s71, 1
      %p75 = scmp.eq.s32.totalorder %s16, 1
      %p76 = scmp.ne.s32.totalorder %s71, %s73
      %p77 = scmp.eq.s32.totalorder %s16, 0
      %p78 = por %p76, %p77
      %p79 = scmp.ne.s32.totalorder %s71, %s73
      %p80 = scmp.eq.s32.totalorder %s21, 1
      %p81 = por %p79, %p80
      %p82 = scmp.ne.s32.totalorder %s73, %s74
      %p83 = scmp.eq.s32.totalorder %s21, 0
      %p84 = por %p82, %p83
      %p85 = scmp.ne.s32.totalorder %s73, %s74
      %p86 = scmp.eq.s32.totalorder %s22, 1
      %p87 = por %p85, %p86
      %p89 = scmp.ne.s32.totalorder %s74, %s88
      %p90 = scmp.eq.s32.totalorder %s22, 0
      %p91 = por %p89, %p90
      %s92 = ssub.s32 %s16, %s23
      %p93 = scmp.eq.s32.totalorder %s92, 0
      %s95 = sadd.s32 %s94, 1
      %s96 = scalar_select %p93, %s94, %s95
      %p99 = pneg %p93
      %p100 = scmp.eq.s32.totalorder %s16, 1
      %p101 = por %p99, %p100
      %p102 = scmp.ne.s32.totalorder %s94, %s97
      %p103 = scmp.eq.s32.totalorder %s16, 0
      %p104 = por %p102, %p103
      %p105 = scmp.ne.s32.totalorder %s94, %s97
      %p106 = scmp.eq.s32.totalorder %s21, 1
      %p107 = por %p105, %p106
      %p108 = scmp.ne.s32.totalorder %s97, %s98
      %p109 = scmp.eq.s32.totalorder %s21, 0
      %p110 = por %p108, %p109
      %p111 = scmp.ne.s32.totalorder %s97, %s98
      %p112 = scmp.eq.s32.totalorder %s22, 1
      %p113 = por %p111, %p112
      %p115 = scmp.ne.s32.totalorder %s98, %s114
      %p116 = scmp.eq.s32.totalorder %s22, 0
      %p117 = por %p115, %p116
      %p118 = scmp.le.s32.totalorder 1, %s16
      %p119 = scmp.lt.s32.totalorder %s16, 3
      %p120 = pnand %p118, %p119
      %p121 = pneg %p120
      // Predicated region
      $region9: #{tpu_custom_call.1} parent=5 // pred_check
        _
      $region10: #{tpu_custom_call.1} parent=5 // pred_check_branch
        %123 = sbr.rel (%p120) target = $region12
      $region11: #{tpu_custom_call.1} parent=5 // pred_region
        %s124 = ssub.s32 %s16, 1
        // Predicated region
        $region13: #{tpu_custom_call.1} parent=11 // pred_check
          %p125 = pneg %p63
        $region14: #{tpu_custom_call.1} parent=11 // pred_check_branch
          %127 = sbr.rel (%p125) target = $region16
        $region15: #{tpu_custom_call.1} parent=11 // pred_region
          %s129 = ssub.s32 2048, 2048
          %130 = vsyncadd [#allocation6], %s129
          %s131 = sshll.u32 [#allocation5], 4
          %s132 = int_to_ptr.vmem [resolvable:$true] %s131
          %137 = dma.hbm_to_vmem [thread:$0]  %s1, 2048, %s132, [#allocation6], 64, 64, 4
        $region16: #{tpu_custom_call.1} parent=11 // pred_fallthru
          _
        // Predicated region
        $region17: #{tpu_custom_call.1} parent=11 // pred_check
          %p138 = pneg %p84
        $region18: #{tpu_custom_call.1} parent=11 // pred_check_branch
          %140 = sbr.rel (%p138) target = $region20
        $region19: #{tpu_custom_call.1} parent=11 // pred_region
          %s142 = ssub.s32 256, 256
          %143 = vsyncadd [#allocation6], %s142
          %s144 = sshll.u32 [#allocation7], 4
          %s145 = int_to_ptr.vmem [resolvable:$true] %s144
          %150 = dma.hbm_to_vmem [thread:$0]  %s2, 256, %s145, [#allocation6], 128, 128, 8
        $region20: #{tpu_custom_call.1} parent=11 // pred_fallthru
          _
      $region12: #{tpu_custom_call.1} parent=5 // pred_fallthru
        _
      %p151 = scmp.lt.s32.totalorder %s16, 2
      // Predicated region
      $region21: #{tpu_custom_call.1} parent=5 // pred_check
        %p152 = pneg %p151
      $region22: #{tpu_custom_call.1} parent=5 // pred_check_branch
        %154 = sbr.rel (%p152) target = $region24
      $region23: #{tpu_custom_call.1} parent=5 // pred_region
        // Predicated region
        $region25: #{tpu_custom_call.1} parent=23 // pred_check
          %p155 = pneg %p36
        $region26: #{tpu_custom_call.1} parent=23 // pred_check_branch
          %157 = sbr.rel (%p155) target = $region28
        $region27: #{tpu_custom_call.1} parent=23 // pred_region
          %s158 = sand.u32 %s26, 1
          %s159 = scalar_lea.sflag [#allocation3], %s158
          %s160 = sand.u32 %s26, 1
          %s161 = smul.addr %s160, 16
          %s162 = scalar_lea.vmem [#allocation2], %s161
          %s163 = smul.u32 2, %s16
          %s165 = ssub.s32 256, 256
          %166 = vsyncadd %s159, %s165
          %s167 = smul.addr %s163, 2
          %s168 = smul.addr %s167, 64
          %s169 = scalar_lea.hbm %s0, %s168
          %s170 = sshll.u32 %s162, 4
          %s171 = int_to_ptr.vmem [resolvable:$true] %s170
          %176 = dma.hbm_to_vmem [thread:$0]  %s169, 256, %s171, %s159, 128, 128, 8
        $region28: #{tpu_custom_call.1} parent=23 // pred_fallthru
          _
      $region24: #{tpu_custom_call.1} parent=5 // pred_fallthru
        _
      %p177 = scmp.le.s32.totalorder 1, %s16
      %p178 = scmp.lt.s32.totalorder %s16, 3
      %p179 = pnand %p177, %p178
      %p180 = pneg %p179
      // Predicated region
      $region29: #{tpu_custom_call.1} parent=5 // pred_check
        _
      $region30: #{tpu_custom_call.1} parent=5 // pred_check_branch
        %182 = sbr.rel (%p179) target = $region32
      $region31: #{tpu_custom_call.1} parent=5 // pred_region
        %s183 = ssub.s32 %s16, 1
        %s184 = sand.u32 %s29, 1
        %s185 = scalar_lea.sflag [#allocation3], %s184
        %s186 = sand.u32 %s29, 1
        %s187 = smul.addr %s186, 16
        %s188 = scalar_lea.vmem [#allocation2], %s187
        // Predicated region
        $region33: #{tpu_custom_call.1} parent=31 // pred_check
          %p189 = pneg %p42
        $region34: #{tpu_custom_call.1} parent=31 // pred_check_branch
          %191 = sbr.rel (%p189) target = $region36
        $region35: #{tpu_custom_call.1} parent=31 // pred_region
          %192 = dma.done %s185, 256
        $region36: #{tpu_custom_call.1} parent=31 // pred_fallthru
          _
        // Predicated region
        $region37: #{tpu_custom_call.1} parent=31 // pred_check
          %p193 = pneg %p63
        $region38: #{tpu_custom_call.1} parent=31 // pred_check_branch
          %195 = sbr.rel (%p193) target = $region40
        $region39: #{tpu_custom_call.1} parent=31 // pred_region
          %196 = dma.done [#allocation6], 2048
        $region40: #{tpu_custom_call.1} parent=31 // pred_fallthru
          _
        // Predicated region
        $region41: #{tpu_custom_call.1} parent=31 // pred_check
          %p197 = pneg %p84
        $region42: #{tpu_custom_call.1} parent=31 // pred_check_branch
          %199 = sbr.rel (%p197) target = $region44
        $region43: #{tpu_custom_call.1} parent=31 // pred_region
          %200 = dma.done [#allocation6], 256
        $region44: #{tpu_custom_call.1} parent=31 // pred_fallthru
          _
        %s201 = sand.u32 %s29, 1
        %s202 = scalar_lea.sflag [#allocation3], %s201
        %s203 = sand.u32 %s29, 1
        %s204 = smul.addr %s203, 16
        %s205 = scalar_lea.vmem [#allocation2], %s204
        %p206 = pneg %p42
        %p207 = pneg %p39
        %p208 = pneg %p63
        %p209 = pneg %p60
        %p210 = pneg %p84
        %p211 = pneg %p81
        %p212 = pneg %p110
        %p213 = pneg %p107
        %s214 = sand.u32 %s97, 1
        %s215 = scalar_lea.sflag [#allocation4], %s214
        %s216 = sand.u32 %s97, 1
        %s217 = smul.addr %s216, 16
        %s218 = scalar_lea.vmem [#allocation8], %s217
        %s219 = smul.u32 2, %s21
        %s220 = smul.u32 2, %s21
        %v222 = vld [vmem:[%s188] sm:$0xff]
        %v223 = vld [vmem:[%s188 + $0x8] sm:$0xff]
        %v224 = vld [vmem:[#allocation5] sm:$0xf]
        %v225 = vld [vmem:[#allocation5 + $0x4] sm:$0xf]
        %v226 = vld [vmem:[#allocation5 + $0x8] sm:$0xf]
        %v227 = vld [vmem:[#allocation5 + $0xc] sm:$0xf]
        %v228 = vld [vmem:[#allocation5 + $0x10] sm:$0xf]
        %v229 = vld [vmem:[#allocation5 + $0x14] sm:$0xf]
        %v230 = vld [vmem:[#allocation5 + $0x18] sm:$0xf]
        %v231 = vld [vmem:[#allocation5 + $0x1c] sm:$0xf]
        %v232 = vld [vmem:[#allocation5 + $0x20] sm:$0xf]
        %v233 = vld [vmem:[#allocation5 + $0x24] sm:$0xf]
        %v234 = vld [vmem:[#allocation5 + $0x28] sm:$0xf]
        %v235 = vld [vmem:[#allocation5 + $0x2c] sm:$0xf]
        %v236 = vld [vmem:[#allocation5 + $0x30] sm:$0xf]
        %v237 = vld [vmem:[#allocation5 + $0x34] sm:$0xf]
        %v238 = vld [vmem:[#allocation5 + $0x38] sm:$0xf]
        %v239 = vld [vmem:[#allocation5 + $0x3c] sm:$0xf]
        %v240 = vld [vmem:[#allocation5 + $0x40] sm:$0xf]
        %v241 = vld [vmem:[#allocation5 + $0x44] sm:$0xf]
        %v242 = vld [vmem:[#allocation5 + $0x48] sm:$0xf]
        %v243 = vld [vmem:[#allocation5 + $0x4c] sm:$0xf]
        %v244 = vld [vmem:[#allocation5 + $0x50] sm:$0xf]
        %v245 = vld [vmem:[#allocation5 + $0x54] sm:$0xf]
        %v246 = vld [vmem:[#allocation5 + $0x58] sm:$0xf]
        %v247 = vld [vmem:[#allocation5 + $0x5c] sm:$0xf]
        %v248 = vld [vmem:[#allocation5 + $0x60] sm:$0xf]
        %v249 = vld [vmem:[#allocation5 + $0x64] sm:$0xf]
        %v250 = vld [vmem:[#allocation5 + $0x68] sm:$0xf]
        %v251 = vld [vmem:[#allocation5 + $0x6c] sm:$0xf]
        %v252 = vld [vmem:[#allocation5 + $0x70] sm:$0xf]
        %v253 = vld [vmem:[#allocation5 + $0x74] sm:$0xf]
        %v254 = vld [vmem:[#allocation5 + $0x78] sm:$0xf]
        %v255 = vld [vmem:[#allocation5 + $0x7c] sm:$0xf]
        %v256 = vld [vmem:[#allocation7] sm:$0xff]
        %v257 = vld [vmem:[#allocation7 + $0x8] sm:$0xff]
        %v260 = vunpack.c.l.b16 %v222
        %v261 = vunpack.c.h.b16 %v222
        %v262 = vunpack.c.l.b16 %v223
        %v263 = vunpack.c.h.b16 %v223
        %v264 = vpack.c.b16 %v262, %v260
        %v265 = vpack.c.b16 %v263, %v261
        %v300 = vunpack.c.l.b16 %v224
        %v301 = vunpack.c.l.b16 %v225
        %v302 = vunpack.c.l.b16 %v226
        %v303 = vunpack.c.l.b16 %v227
        %v304 = vunpack.c.l.b16 %v228
        %v305 = vunpack.c.l.b16 %v229
        %v306 = vunpack.c.l.b16 %v230
        %v307 = vunpack.c.l.b16 %v231
        %v308 = vunpack.c.l.b16 %v232
        %v309 = vunpack.c.l.b16 %v233
        %v310 = vunpack.c.l.b16 %v234
        %v311 = vunpack.c.l.b16 %v235
        %v312 = vunpack.c.l.b16 %v236
        %v313 = vunpack.c.l.b16 %v237
        %v314 = vunpack.c.l.b16 %v238
        %v315 = vunpack.c.l.b16 %v239
        %v316 = vunpack.c.l.b16 %v240
        %v317 = vunpack.c.l.b16 %v241
        %v318 = vunpack.c.l.b16 %v242
        %v319 = vunpack.c.l.b16 %v243
        %v320 = vunpack.c.l.b16 %v244
        %v321 = vunpack.c.l.b16 %v245
        %v322 = vunpack.c.l.b16 %v246
        %v323 = vunpack.c.l.b16 %v247
        %v324 = vunpack.c.l.b16 %v248
        %v325 = vunpack.c.l.b16 %v249
        %v326 = vunpack.c.l.b16 %v250
        %v327 = vunpack.c.l.b16 %v251
        %v328 = vunpack.c.l.b16 %v252
        %v329 = vunpack.c.l.b16 %v253
        %v330 = vunpack.c.l.b16 %v254
        %v331 = vunpack.c.l.b16 %v255
        %v332 = vpack.c.b16 %v301, %v300
        %v333 = vpack.c.b16 %v303, %v302
        %v334 = vpack.c.b16 %v305, %v304
        %v335 = vpack.c.b16 %v307, %v306
        %v336 = vpack.c.b16 %v309, %v308
        %v337 = vpack.c.b16 %v311, %v310
        %v338 = vpack.c.b16 %v313, %v312
        %v339 = vpack.c.b16 %v315, %v314
        %v340 = vpack.c.b16 %v317, %v316
        %v341 = vpack.c.b16 %v319, %v318
        %v342 = vpack.c.b16 %v321, %v320
        %v343 = vpack.c.b16 %v323, %v322
        %v344 = vpack.c.b16 %v325, %v324
        %v345 = vpack.c.b16 %v327, %v326
        %v346 = vpack.c.b16 %v329, %v328
        %v347 = vpack.c.b16 %v331, %v330
        %364 = vmatprep.subr.bf16.mxu0 0
        %365 = vmatpush1.bf16.msra.mxu0 %v332
        %366 = vmatprep.subr.bf16.mxu0 0
        %367 = vmatpush1.bf16.msra.mxu0 %v333
        %368 = vmatprep.subr.bf16.mxu0 0
        %369 = vmatpush1.bf16.msra.mxu0 %v334
        %370 = vmatprep.subr.bf16.mxu0 0
        %371 = vmatpush1.bf16.msra.mxu0 %v335
        %372 = vmatprep.subr.bf16.mxu0 0
        %373 = vmatpush1.bf16.msra.mxu0 %v336
        %374 = vmatprep.subr.bf16.mxu0 0
        %375 = vmatpush1.bf16.msra.mxu0 %v337
        %376 = vmatprep.subr.bf16.mxu0 0
        %377 = vmatpush1.bf16.msra.mxu0 %v338
        %378 = vmatprep.subr.bf16.mxu0 0
        %379 = vmatpush1.bf16.msra.mxu0 %v339
        %380 = vmatprep.subr.bf16.mxu0 0
        %381 = vmatpush1.bf16.msra.mxu0 %v340
        %382 = vmatprep.subr.bf16.mxu0 0
        %383 = vmatpush1.bf16.msra.mxu0 %v341
        %384 = vmatprep.subr.bf16.mxu0 0
        %385 = vmatpush1.bf16.msra.mxu0 %v342
        %386 = vmatprep.subr.bf16.mxu0 0
        %387 = vmatpush1.bf16.msra.mxu0 %v343
        %388 = vmatprep.subr.bf16.mxu0 0
        %389 = vmatpush1.bf16.msra.mxu0 %v344
        %390 = vmatprep.subr.bf16.mxu0 0
        %391 = vmatpush1.bf16.msra.mxu0 %v345
        %392 = vmatprep.subr.bf16.mxu0 0
        %393 = vmatpush1.bf16.msra.mxu0 %v346
        %394 = vmatprep.subr.bf16.mxu0 0
        %395 = vmatpush1.bf16.msra.mxu0 %v347
        %396 = vmatprep.mubr.bf16.mxu0 %v265
        %397 = vmatmul.mubr.bf16.gmra.mrb[0].mxu0 %v264
        %v398 = vpop.f32.mrb[0].mxu0
        %v399 = vadd.f32 %v256, %v398
        %v400 = vpop.f32.mrb[0].mxu0
        %v401 = vpop.f32.mrb[0].mxu0
        %v402 = vadd.f32 %v257, %v401
        %v403 = vpop.f32.mrb[0].mxu0
        %404 = vdwg.mxu0
        %405 = vst [vmem:[%s218] sm:$0xff] %v399
        %406 = vst [vmem:[%s218 + $0x8] sm:$0xff] %v402
        %s407 = sand.u32 %s97, 1
        %s408 = scalar_lea.sflag [#allocation4], %s407
        %s409 = sand.u32 %s97, 1
        %s410 = smul.addr %s409, 16
        %s411 = scalar_lea.vmem [#allocation8], %s410
        // Predicated region
        $region45: #{tpu_custom_call.1} parent=31 // pred_check
          %p412 = pneg %p107
        $region46: #{tpu_custom_call.1} parent=31 // pred_check_branch
          %414 = sbr.rel (%p412) target = $region48
        $region47: #{tpu_custom_call.1} parent=31 // pred_region
          %s415 = smul.u32 2, %s21
          %s417 = ssub.s32 256, 256
          %418 = vsyncadd %s408, %s417
          %s419 = smul.addr %s415, 128
          %s420 = scalar_lea.hbm %s3, %s419
          %s421 = sshll.u32 %s411, 4
          %s422 = int_to_ptr.vmem [resolvable:$true] %s421
          %427 = dma.vmem_to_hbm [thread:$0]  %s422, 256, %s420, %s408, 128, 128, 8
        $region48: #{tpu_custom_call.1} parent=31 // pred_fallthru
          _
      $region32: #{tpu_custom_call.1} parent=5 // pred_fallthru
        _
      %p428 = scmp.le.s32.totalorder 2, %s16
      // Predicated region
      $region49: #{tpu_custom_call.1} parent=5 // pred_check
        %p429 = pneg %p428
      $region50: #{tpu_custom_call.1} parent=5 // pred_check_branch
        %431 = sbr.rel (%p429) target = $region52
      $region51: #{tpu_custom_call.1} parent=5 // pred_region
        %s432 = ssub.s32 %s16, 2
        // Predicated region
        $region53: #{tpu_custom_call.1} parent=51 // pred_check
          %p433 = pneg %p113
        $region54: #{tpu_custom_call.1} parent=51 // pred_check_branch
          %435 = sbr.rel (%p433) target = $region56
        $region55: #{tpu_custom_call.1} parent=51 // pred_region
          %s436 = sand.u32 %s98, 1
          %s437 = scalar_lea.sflag [#allocation4], %s436
          %s438 = sand.u32 %s98, 1
          %s439 = smul.addr %s438, 16
          %s440 = scalar_lea.vmem [#allocation8], %s439
          %441 = dma.done %s437, 256
        $region56: #{tpu_custom_call.1} parent=51 // pred_fallthru
          _
      $region52: #{tpu_custom_call.1} parent=5 // pred_fallthru
        _
    $region6: #{tpu_custom_call.1} parent=1 // loop_footer
      %s20 = sadd.s32 1, %s16
    $region7: #{tpu_custom_call.1} parent=1 // loop_footer_branch
      %15 = sbr.rel target = $region3
    $region8: #{tpu_custom_call.1} parent=1 // loop_exit
      _
    %442 = vsyncpa [#allocation3], 1
    %s443 = scalar_lea.sflag [#allocation3], 1
    %444 = vsyncpa %s443, 1
    %445 = vsyncpa [#allocation6], 1
    %446 = vsyncpa [#allocation4], 1
    %s447 = scalar_lea.sflag [#allocation4], 1
    %448 = vsyncpa %s447, 1

</llo_original>
